<compile_context>
chip_gen: v7x
topology: tpu7x:2x2x1
jax: 0.10.0
libtpu: 0.0.40
codegen_flags: <defaults>
</compile_context>

<pallas_src>
import functools

import numpy as np
import jax
import jax.numpy as jnp
from jax.experimental import pallas as pl
from jax.experimental.pallas import tpu as pltpu

_LANES = 128
_SUBLANES = 8
_VMEM_TILE_BUDGET = 16 << 20        # total double-buffered tile bytes we aim for
_VMEM_LIMIT = 32 << 20              # scoped VMEM we request (default on v6e/v7x, safe on v5e)


def _round_up(x: int, m: int) -> int:
    return ((x + m - 1) // m) * m


def _pick_tile_rows(n_rows: int, row_bytes_vmem: int, row_bytes_hbm: int) -> int:
    """Rows of the row-major operand per grid step.

    row_bytes_vmem: per-row VMEM cost of all double-buffered tiles (lane padding included).
    row_bytes_hbm : per-row HBM bytes actually streamed (used for the split heuristic).
    """
    cap = max(_SUBLANES, (_VMEM_TILE_BUDGET // max(row_bytes_vmem, 1)) // _SUBLANES * _SUBLANES)
    if n_rows > cap:
        return cap                                   # cdiv grid, partial last tile is masked
    # Mid-size batches: prefer >= 2 grid steps so ("parallel",) can use both TCs on v7x.
    if n_rows * row_bytes_hbm >= (2 << 20) and n_rows > 2 * _SUBLANES:
        return _round_up((n_rows + 1) // 2, _SUBLANES)
    return n_rows                                    # single tile: block == full extent (always legal)


# ---------------------------------------------------------------------------
# pltpu.roll direction probe (run once, eagerly, on first use).
# ---------------------------------------------------------------------------
def _roll_probe_kernel(o_ref):
    lane = jax.lax.broadcasted_iota(jnp.int32, (_SUBLANES, _LANES), 1)
    o_ref[...] = pltpu.roll(lane, 1, axis=1)


_ROLL_CONVENTION = None  # "np" (roll(x,s)[i]==x[i-s]) | "anti" (x[i+s]) | "unavailable"


def _roll_convention() -> str:
    global _ROLL_CONVENTION
    if _ROLL_CONVENTION is None:
        try:
            out = pl.pallas_call(
                _roll_probe_kernel,
                out_shape=jax.ShapeDtypeStruct((_SUBLANES, _LANES), jnp.int32),
            )()
            v = int(jax.device_get(out)[0, 0])
            if v == _LANES - 1:
                _ROLL_CONVENTION = "np"
            elif v == 1:
                _ROLL_CONVENTION = "anti"
            else:
                _ROLL_CONVENTION = "unavailable"
        except Exception:  # any lowering / tracing issue -> use the row-wise fallback path
            _ROLL_CONVENTION = "unavailable"
    return _ROLL_CONVENTION


def _compaction_shifts(seg: int, pack: int, np_semantics: bool):
    """Roll shifts that move each segment's total into lanes 0..pack-1."""
    if np_semantics:
        # tree with +shifts leaves segment j's sum at lane seg*j + seg - 1
        return tuple((-(seg - 1) * (j + 1)) % _LANES for j in range(pack))
    # anti convention: segment j's sum sits at lane seg*j
    return tuple(((seg - 1) * j) % _LANES for j in range(pack))


# ---------------------------------------------------------------------------
# Kernels
# ---------------------------------------------------------------------------
def _packed_kernel(x_ref, w_ref, b_ref, o_ref, *, seg: int, shifts):
    """Lane-dense path.  x_ref: (tm_p, 128); w_ref: (1, 128); b_ref: (1,) SMEM;
    o_ref: (tm_p, pack) with pack = 128 // seg."""
    p = x_ref[...] * w_ref[...]                       # full-vreg VPU multiply
    # log-tree sliding-window sum over `seg` lanes (XLU rolls + VPU adds)
    acc = p
    s = 1
    while s < seg:
        acc = acc + pltpu.roll(acc, s, axis=1)
        s *= 2
    # Each seg-lane segment's total sits at one lane per segment; rotate those heads
    # into lanes 0..pack-1 (shift set depends on the probed roll direction).
    pack = o_ref.shape[-1]
    lane = jax.lax.broadcasted_iota(jnp.int32, acc.shape, 1)
    out = pltpu.roll(acc, shifts[0], axis=1) if shifts[0] else acc
    for j in range(1, pack):
        rj = pltpu.roll(acc, shifts[j], axis=1) if shifts[j] else acc
        out = jnp.where(lane == j, rj, out)
    o_ref[...] = (out[:, :pack] + b_ref[0]).astype(o_ref.dtype)


def _rowwise_kernel(x_ref, w_ref, b_ref, o_ref):
    """Generic fallback.  x_ref: (tm, K); w_ref: (out_dims, K); b_ref: (out_dims,) SMEM;
    o_ref: (tm, out_dims).  Pure VPU + XLU (no MXU) — right call for out_dims ~ 1."""
    x = x_ref[...]
    out_dims = o_ref.shape[-1]
    # out_dims is a small static constant -> unrolled at trace time.
    # TODO(synk): if out_dims ever grows past ~8, switch to one MXU jnp.dot with N padded to 128.
    for o in range(out_dims):
        w_row = w_ref[o, :]
        acc = jnp.sum(x * w_row[None, :], axis=-1, keepdims=True)   # VPU mul + XLU reduce
        o_ref[:, o:o + 1] = (acc + b_ref[o]).astype(o_ref.dtype)


# ---------------------------------------------------------------------------
# Wrappers
# ---------------------------------------------------------------------------
def _call_packed(x, w, b):
    batch, in_dims = x.shape
    pack = _LANES // in_dims
    packed_rows = batch // pack
    itemsize = x.dtype.itemsize

    x_packed = x.reshape(packed_rows, _LANES)                    # free: contiguous reshape
    w_tiled = jnp.tile(w.reshape(1, in_dims), (1, pack))         # (1, 128), tiny

    # per-row VMEM: 2 x X buffer (128 lanes) + 2 x output buffer (lane-padded to 128)
    row_vmem = 2 * _LANES * itemsize + 2 * _LANES * itemsize
    tm_p = _pick_tile_rows(packed_rows, row_vmem, _LANES * itemsize)
    grid = (pl.cdiv(packed_rows, tm_p),)

    shifts = _compaction_shifts(in_dims, pack, _roll_convention() == "np")
    kernel = functools.partial(_packed_kernel, seg=in_dims, shifts=shifts)

    out = pl.pallas_call(
        kernel,
        out_shape=jax.ShapeDtypeStruct((packed_rows, pack), x.dtype),
        grid_spec=pltpu.PrefetchScalarGridSpec(
            num_scalar_prefetch=0,
            grid=grid,
            in_specs=[
                pl.BlockSpec((tm_p, _LANES), lambda i: (i, 0)),      # X row tiles, pipelined
                pl.BlockSpec((1, _LANES), lambda i: (0, 0)),         # W resident across grid
                pl.BlockSpec(memory_space=pltpu.MemorySpace.SMEM),   # bias: scalar read, no VMEM DMA
            ],
            out_specs=pl.BlockSpec((tm_p, pack), lambda i: (i, 0)),
        ),
        compiler_params=pltpu.CompilerParams(
            dimension_semantics=("parallel",),
            vmem_limit_bytes=_VMEM_LIMIT,
        ),
    )(x_packed, w_tiled, b)
    return out.reshape(batch, 1)                                  # free: contiguous reshape


def _call_rowwise(x, w, b):
    batch, in_dims = x.shape
    out_dims = w.shape[0]
    itemsize = x.dtype.itemsize

    # per-row VMEM with (8,128) lane padding of both the X tile and the output tile
    x_row = _round_up(in_dims, _LANES) * itemsize
    o_row = _round_up(out_dims, _LANES) * itemsize
    tm = _pick_tile_rows(batch, 2 * x_row + 2 * o_row, in_dims * itemsize)
    grid = (pl.cdiv(batch, tm),)

    return pl.pallas_call(
        _rowwise_kernel,
        out_shape=jax.ShapeDtypeStruct((batch, out_dims), x.dtype),
        grid_spec=pltpu.PrefetchScalarGridSpec(
            num_scalar_prefetch=0,
            grid=grid,
            in_specs=[
                pl.BlockSpec((tm, in_dims), lambda i: (i, 0)),       # X row tiles, pipelined
                pl.BlockSpec((out_dims, in_dims), lambda i: (0, 0)), # W resident across grid
                pl.BlockSpec(memory_space=pltpu.MemorySpace.SMEM),   # bias in SMEM
            ],
            out_specs=pl.BlockSpec((tm, out_dims), lambda i: (i, 0)),
        ),
        compiler_params=pltpu.CompilerParams(
            dimension_semantics=("parallel",),
            vmem_limit_bytes=_VMEM_LIMIT,
        ),
    )(x, w, b)


def linear_regression_forward(x, w, b):
    """y = x @ w.T + b

    x : (batch, in_dims)     float32
    w : (out_dims, in_dims)  float32   (native torch nn.Linear layout, NOT transposed)
    b : (out_dims,)          float32
    """
    batch, in_dims = x.shape
    out_dims = w.shape[0]
    can_pack = (
        out_dims == 1
        and in_dims > 0
        and _LANES % in_dims == 0
        and batch % (_LANES // in_dims) == 0
        and _roll_convention() in ("np", "anti")
    )
    if can_pack:
        try:
            return _call_packed(x, w, b)
        except Exception:
            # Never trade a result for a perf path: fall back to the known-good kernel.
            pass
    return _call_rowwise(x, w, b)


if __name__ == "__main__":
    # Module config: LinearRegression(in_dims=32, out_dims=1).
    in_dims, out_dims = 32, 1

    key = jax.random.PRNGKey(0)
    kx, kw, kb, kx2, kx3 = jax.random.split(key, 5)

    # Params mimicking torch.nn.Linear default init U(-1/sqrt(K), 1/sqrt(K)).
    bound = 1.0 / float(np.sqrt(in_dims))
    w = jax.random.uniform(kw, (out_dims, in_dims), jnp.float32, -bound, bound)
    b = jax.random.uniform(kb, (out_dims,), jnp.float32, -bound, bound)

    def check(x):
        y = jax.block_until_ready(linear_regression_forward(x, w, b))
        y_ref = np.asarray(x, np.float64) @ np.asarray(w, np.float64).T + np.asarray(b, np.float64)
        assert y.shape == y_ref.shape
        np.testing.assert_allclose(np.asarray(y, np.float64), y_ref, atol=1e-5, rtol=1e-5)

    # Small case from the module spec (lane-dense packed path, single tile).
    check(jax.random.normal(kx, (8, in_dims), jnp.float32))
    # Batch not divisible by the packing factor -> generic row-wise fallback path.
    check(jax.random.normal(kx2, (37, in_dims), jnp.float32))
    # Mid-size batch: >= 2 grid steps and a partial (masked) last tile via cdiv.
    check(jax.random.normal(kx3, (40004, in_dims), jnp.float32))

    print("KERNEL_OK")
</pallas_src>

<mosaic_0001>
module attributes {stable_mosaic.version = 11 : i64} {
  func.func @_rowwise_kernel(%arg0: i32, %arg1: memref<8x32xf32, #tpu.memory_space<vmem>>, %arg2: memref<1x32xf32, #tpu.memory_space<vmem>>, %arg3: memref<1xf32, #tpu.memory_space<smem>>, %arg4: memref<8x1xf32, #tpu.memory_space<vmem>>) attributes {dimension_semantics = [#tpu.dimension_semantics<parallel>], iteration_bounds = array<i64: 1>, scalar_prefetch = 0 : i64, scratch_operands = 0 : i64, tpu.core_type = #tpu.core_type<tc>, window_params = [{transform_indices = @transform_0, window_bounds = array<i64: 8, 32>}, {pipeline_mode = #tpu.pipeline_mode<synchronous>, transform_indices = @transform_1, window_bounds = array<i64: 1, 32>}, {transform_indices = @transform_2, window_bounds = array<i64: 1>}, {transform_indices = @transform_3, window_bounds = array<i64: 8, 1>}]} {
    %c0 = arith.constant 0 : index
    %c0_0 = arith.constant 0 : index
    %0 = vector.load %arg1[%c0, %c0_0] : memref<8x32xf32, #tpu.memory_space<vmem>>, vector<8x32xf32>
    %c0_1 = arith.constant 0 : index
    %c0_2 = arith.constant 0 : index
    %1 = vector.load %arg2[%c0_1, %c0_2] : memref<1x32xf32, #tpu.memory_space<vmem>>, vector<1x32xf32>
    %2 = vector.shape_cast %1 : vector<1x32xf32> to vector<32xf32>
    %3 = vector.shape_cast %2 : vector<32xf32> to vector<1x32xf32>
    %4 = vector.broadcast %3 : vector<1x32xf32> to vector<8x32xf32>
    %5 = arith.mulf %0, %4 : vector<8x32xf32>
    %cst = arith.constant dense<0.000000e+00> : vector<8xf32>
    %6 = vector.multi_reduction <add>, %5, %cst [1] : vector<8x32xf32> to vector<8xf32>
    %7 = vector.shape_cast %6 : vector<8xf32> to vector<8x1xf32>
    %c0_3 = arith.constant 0 : index
    %8 = memref.load %arg3[%c0_3] : memref<1xf32, #tpu.memory_space<smem>>
    %9 = vector.broadcast %8 : f32 to vector<8x1xf32>
    %10 = arith.addf %7, %9 : vector<8x1xf32>
    %c0_4 = arith.constant 0 : index
    %c0_5 = arith.constant 0 : index
    %11 = vector.load %arg4[%c0_4, %c0_5] : memref<8x1xf32, #tpu.memory_space<vmem>>, vector<8x1xf32>
    tpu.vector_store %arg4[%c0_4, %c0_5], %10 {strides = array<i32>} : memref<8x1xf32, #tpu.memory_space<vmem>>, vector<8x1xf32>,
    return
  }
  func.func @transform_0(%arg0: i32) -> (i32, i32) {
    %c0_i32 = arith.constant 0 : i32
    %c0_i32_0 = arith.constant 0 : i32
    return %arg0, %c0_i32 : i32, i32
  }
  func.func @transform_1(%arg0: i32) -> (i32, i32) {
    %c0_i32 = arith.constant 0 : i32
    %c0_i32_0 = arith.constant 0 : i32
    %c0_i32_1 = arith.constant 0 : i32
    return %c0_i32, %c0_i32_0 : i32, i32
  }
  func.func @transform_2(%arg0: i32) -> i32 {
    %c0_i32 = arith.constant 0 : i32
    %c0_i32_0 = arith.constant 0 : i32
    return %c0_i32 : i32
  }
  func.func @transform_3(%arg0: i32) -> (i32, i32) {
    %c0_i32 = arith.constant 0 : i32
    %c0_i32_0 = arith.constant 0 : i32
    return %arg0, %c0_i32 : i32, i32
  }
}

</mosaic_0001>

<llo_original>
// kernel: tpu_custom_call.1
$region0: #{tpu_custom_call.1}
  #allocation0 [shape = 'u32[]', space=smem, size = 0x4, offset = 0x4, fixed_abs, tag = 'smem constant byte address 0x4 - core index']
  #allocation1 [shape = 'u32[144,128]{1,0:T(1,128)}', space=vmem, size = 0x12000, scoped, tag = 'internal scratch']
  #allocation2 [shape = 'f32[1]{0:T(128)S(6)}', space=smem, size = 0x200, scoped, tag = 'scoped memory for tpu_custom_call.1']
  %s0 = inlined_call_operand.hbm [shape: f32[8,32], index: 0, kind: input, shape index: {}]
  %s1 = inlined_call_operand.vmem [shape: f32[1,32], index: 1, kind: input, shape index: {}]
  %s2 = inlined_call_operand.<no memory space> [shape: f32[1], index: 2, kind: input, shape index: {}]
  %s3 = inlined_call_operand.vmem [shape: f32[8,1], index: 3, kind: output, shape index: {}]
  %s4 = sld [smem:[#allocation0]]
  $region26: #{tpu_custom_call.1} parent=0
    _
  %s6 = ssub.s32 1, %s4
  %s7 = scalar_select 0, %s6, %s4
  %8 = sst [smem:[#allocation2]] %s2
  $region1: #{tpu_custom_call.1} parent=0
    #allocation3 [shape = 'u8[4096]{0}', space=vmem, size = 0x1000, scoped, tag = 'input window, operand 0, single buffered']
    #allocation4 [shape = 's32[1]{0}', space=sflag, size = 0x4, scoped, tag = 'scoped memory for tpu_custom_call.1']
    %9 = vsyncpa [#allocation4], 0
    // Predicated region
    $region2: #{tpu_custom_call.1} parent=1 // pred_check
      _
    $region3: #{tpu_custom_call.1} parent=1 // pred_check_branch
      %11 = sbr.rel (0) target = $region5
    $region4: #{tpu_custom_call.1} parent=1 // pred_region
      %s13 = ssub.s32 128, 128
      %14 = vsyncadd [#allocation4], %s13
      %s16 = sshll.u32 [#allocation3], 4
      %s17 = int_to_ptr.vmem [resolvable:$true] %s16
      %19 = dma.hbm_to_vmem [thread:$0]  %s0, 128, %s17, [#allocation4]
    $region5: #{tpu_custom_call.1} parent=1 // pred_fallthru
      _
    // Predicated region
    $region6: #{tpu_custom_call.1} parent=1 // pred_check
      _
    $region7: #{tpu_custom_call.1} parent=1 // pred_check_branch
      %21 = sbr.rel (0) target = $region9
    $region8: #{tpu_custom_call.1} parent=1 // pred_region
      _
    $region9: #{tpu_custom_call.1} parent=1 // pred_fallthru
      _
    // Predicated region
    $region10: #{tpu_custom_call.1} parent=1 // pred_check
      _
    $region11: #{tpu_custom_call.1} parent=1 // pred_check_branch
      %23 = sbr.rel (0) target = $region13
    $region12: #{tpu_custom_call.1} parent=1 // pred_region
      _
    $region13: #{tpu_custom_call.1} parent=1 // pred_fallthru
      _
    // Predicated region
    $region14: #{tpu_custom_call.1} parent=1 // pred_check
      _
    $region15: #{tpu_custom_call.1} parent=1 // pred_check_branch
      %25 = sbr.rel (0) target = $region17
    $region16: #{tpu_custom_call.1} parent=1 // pred_region
      %26 = dma.done [#allocation4], 128
    $region17: #{tpu_custom_call.1} parent=1 // pred_fallthru
      _
    %v27 = vld [vmem:[#allocation3] sm:$0xff]
    %v28 = vld [vmem:[%s1] sm:$0x1]
    %v30 = vlaneseq
    %v31 = vshrl.u32 %v30, 7
    %v32 = vsub.s32 0, %v31
    %v33 = vrot.slane %v28, %v32
    %v35 = vmul.f32 %v27, %v33
    %vm36 = vcmask 261120
    %v37 = vsel %vm36, %v35, 0.0
    %38 = vadd.xlane.f32.xlu0 %v37
    %v39 = vpop.xlane.xlu0 %38
    %s40 = sld [smem:[#allocation2]]
    %v41 = vstv %s40
    %v42 = vadd.f32 %v39, %v41
    %vm43 = vcmask 7168
    %44 = vst.msk [vmem:[%s3] sm:$0xff] %vm43, %v42
    // Predicated region
    $region18: #{tpu_custom_call.1} parent=1 // pred_check
      _
    $region19: #{tpu_custom_call.1} parent=1 // pred_check_branch
      %46 = sbr.rel (0) target = $region21
    $region20: #{tpu_custom_call.1} parent=1 // pred_region
      _
    $region21: #{tpu_custom_call.1} parent=1 // pred_fallthru
      _
    // Predicated region
    $region22: #{tpu_custom_call.1} parent=1 // pred_check
      _
    $region23: #{tpu_custom_call.1} parent=1 // pred_check_branch
      %48 = sbr.rel (0) target = $region25
    $region24: #{tpu_custom_call.1} parent=1 // pred_region
      _
    $region25: #{tpu_custom_call.1} parent=1 // pred_fallthru
      _
    %49 = vsyncpa [#allocation4], 1

</llo_original>
